<compile_context>
chip_gen: v7x
topology: tpu7x:2x2x1
jax: 0.10.0
libtpu: 0.0.40
codegen_flags: <defaults>
</compile_context>

<pallas_src>
import jax
import jax.numpy as jnp
from jax.experimental import pallas as pl
from jax.experimental.pallas import tpu as pltpu

# ----------------------------- small config ----------------------------------------
BATCH = 8          # number of qids per forward call
EMB_DIM = 256      # text_out_dim (lane-dense: multiple of 128)
NUM_IDS = 64       # number of distinct qids available in the pre-extracted store


# ----------------------------- kernel: batched row gather ---------------------------
def gather_kernel(qids_ref, table_ref, out_ref, sem):
    # qids_ref : SMEM (BATCH,) int32   -- scalar-prefetched query ids
    # table_ref: HBM  (NUM_IDS, EMB_DIM) raw ref (memory_space=pl.ANY)
    # out_ref  : VMEM (BATCH, EMB_DIM)   pipeline-managed output block
    # sem      : (BATCH,) DMA semaphores -- one per overlapped row copy
    #
    # Issue all row DMAs first (they run concurrently), then wait on each.
    for i in range(BATCH):                      # static unrolled loop
        qid = qids_ref[i]
        pltpu.make_async_copy(
            table_ref.at[pl.ds(qid, 1), :],     # (1, EMB_DIM) row in the HBM store
            out_ref.at[pl.ds(i, 1), :],         # (1, EMB_DIM) row of the output
            sem.at[i],
        ).start()
    for i in range(BATCH):
        qid = qids_ref[i]
        pltpu.make_async_copy(
            table_ref.at[pl.ds(qid, 1), :],
            out_ref.at[pl.ds(i, 1), :],
            sem.at[i],
        ).wait()


def pre_extracted_embedding(qids, table):
    """qids: (B,) int32 ids; table: (N, D) float32 pre-extracted store -> (B, D)."""
    b, = qids.shape
    n, d = table.shape
    return pl.pallas_call(
        gather_kernel,
        out_shape=jax.ShapeDtypeStruct((b, d), table.dtype),
        grid_spec=pltpu.PrefetchScalarGridSpec(
            num_scalar_prefetch=1,                         # qids -> SMEM
            grid=(1,),                                     # whole batch in one step
            in_specs=[pl.BlockSpec(memory_space=pl.ANY)],  # table stays in HBM
            out_specs=pl.BlockSpec((b, d), lambda i, qids: (0, 0)),
            scratch_shapes=[pltpu.SemaphoreType.DMA((b,))],
        ),
        compiler_params=pltpu.CompilerParams(
            dimension_semantics=("arbitrary",)),
    )(qids, table)


# ----------------------------- demo / self-check ------------------------------------
if __name__ == "__main__":
    key = jax.random.PRNGKey(0)
    k_tab, k_ids = jax.random.split(key)

    # Synthetic "pre-extracted" store: one embedding per qid.
    table = jax.random.normal(k_tab, (NUM_IDS, EMB_DIM), jnp.float32)
    # Batch of query ids (the `qids` argument of PreExtractedEmbedding.forward).
    qids = jax.random.randint(k_ids, (BATCH,), 0, NUM_IDS, dtype=jnp.int32)

    out = pre_extracted_embedding(qids, table)
    out = jax.block_until_ready(out)

    # Reference: stack(table[qid] for qid in qids) == row gather.
    ref = jnp.take(table, qids, axis=0)

    assert out.shape == (BATCH, EMB_DIM)
    assert bool(jnp.all(jnp.isfinite(out)))
    assert bool(jnp.allclose(out, ref, atol=0.0, rtol=0.0))

    print("KERNEL_OK")
</pallas_src>

<mosaic_0001>
module attributes {stable_mosaic.version = 11 : i64} {
  func.func @gather_kernel(%arg0: i32, %arg1: memref<8xi32, #tpu.memory_space<smem>>, %arg2: memref<64x256xf32, #tpu.memory_space<any>>, %arg3: memref<8x256xf32, #tpu.memory_space<vmem>>, %arg4: memref<8x!tpu.dma_semaphore, #tpu.memory_space<semaphore_mem>>) attributes {dimension_semantics = [#tpu.dimension_semantics<arbitrary>], iteration_bounds = array<i64: 1>, scalar_prefetch = 1 : i64, scratch_operands = 1 : i64, tpu.core_type = #tpu.core_type<tc>, window_params = [{}, {pipeline_mode = #tpu.pipeline_mode<synchronous>, transform_indices = @transform_1, window_bounds = array<i64: 8, 256>}]} {
    %c0 = arith.constant 0 : index
    %0 = memref.load %arg1[%c0] : memref<8xi32, #tpu.memory_space<smem>>
    %c0_i32 = arith.constant 0 : i32
    %c0_i32_0 = arith.constant 0 : i32
    %1 = tpu.memref_slice %arg2[%0, %c0_i32_0] : memref<64x256xf32, #tpu.memory_space<any>> -> memref<1x256xf32, #tpu.memory_space<any>>
    %c0_i32_1 = arith.constant 0 : i32
    %c0_i32_2 = arith.constant 0 : i32
    %2 = tpu.memref_slice %arg3[%c0_i32_1, %c0_i32_2] : memref<8x256xf32, #tpu.memory_space<vmem>> -> memref<1x256xf32, #tpu.memory_space<vmem>>
    %3 = tpu.memref_slice %arg4[%c0_i32] : memref<8x!tpu.dma_semaphore, #tpu.memory_space<semaphore_mem>> -> memref<1x!tpu.dma_semaphore, #tpu.memory_space<semaphore_mem>>
    %4 = tpu.memref_squeeze %3 : memref<1x!tpu.dma_semaphore, #tpu.memory_space<semaphore_mem>> -> memref<!tpu.dma_semaphore, #tpu.memory_space<semaphore_mem>>
    tpu.enqueue_dma source(%1 : memref<1x256xf32, #tpu.memory_space<any>>) target(%2 : memref<1x256xf32, #tpu.memory_space<vmem>>) target_semaphore(%4 : memref<!tpu.dma_semaphore, #tpu.memory_space<semaphore_mem>>)
    %c1 = arith.constant 1 : index
    %5 = memref.load %arg1[%c1] : memref<8xi32, #tpu.memory_space<smem>>
    %c1_i32 = arith.constant 1 : i32
    %c0_i32_3 = arith.constant 0 : i32
    %6 = tpu.memref_slice %arg2[%5, %c0_i32_3] : memref<64x256xf32, #tpu.memory_space<any>> -> memref<1x256xf32, #tpu.memory_space<any>>
    %c1_i32_4 = arith.constant 1 : i32
    %c0_i32_5 = arith.constant 0 : i32
    %7 = tpu.memref_slice %arg3[%c1_i32_4, %c0_i32_5] : memref<8x256xf32, #tpu.memory_space<vmem>> -> memref<1x256xf32, #tpu.memory_space<vmem>>
    %8 = tpu.memref_slice %arg4[%c1_i32] : memref<8x!tpu.dma_semaphore, #tpu.memory_space<semaphore_mem>> -> memref<1x!tpu.dma_semaphore, #tpu.memory_space<semaphore_mem>>
    %9 = tpu.memref_squeeze %8 : memref<1x!tpu.dma_semaphore, #tpu.memory_space<semaphore_mem>> -> memref<!tpu.dma_semaphore, #tpu.memory_space<semaphore_mem>>
    tpu.enqueue_dma source(%6 : memref<1x256xf32, #tpu.memory_space<any>>) target(%7 : memref<1x256xf32, #tpu.memory_space<vmem>>) target_semaphore(%9 : memref<!tpu.dma_semaphore, #tpu.memory_space<semaphore_mem>>)
    %c2 = arith.constant 2 : index
    %10 = memref.load %arg1[%c2] : memref<8xi32, #tpu.memory_space<smem>>
    %c2_i32 = arith.constant 2 : i32
    %c0_i32_6 = arith.constant 0 : i32
    %11 = tpu.memref_slice %arg2[%10, %c0_i32_6] : memref<64x256xf32, #tpu.memory_space<any>> -> memref<1x256xf32, #tpu.memory_space<any>>
    %c2_i32_7 = arith.constant 2 : i32
    %c0_i32_8 = arith.constant 0 : i32
    %12 = tpu.memref_slice %arg3[%c2_i32_7, %c0_i32_8] : memref<8x256xf32, #tpu.memory_space<vmem>> -> memref<1x256xf32, #tpu.memory_space<vmem>>
    %13 = tpu.memref_slice %arg4[%c2_i32] : memref<8x!tpu.dma_semaphore, #tpu.memory_space<semaphore_mem>> -> memref<1x!tpu.dma_semaphore, #tpu.memory_space<semaphore_mem>>
    %14 = tpu.memref_squeeze %13 : memref<1x!tpu.dma_semaphore, #tpu.memory_space<semaphore_mem>> -> memref<!tpu.dma_semaphore, #tpu.memory_space<semaphore_mem>>
    tpu.enqueue_dma source(%11 : memref<1x256xf32, #tpu.memory_space<any>>) target(%12 : memref<1x256xf32, #tpu.memory_space<vmem>>) target_semaphore(%14 : memref<!tpu.dma_semaphore, #tpu.memory_space<semaphore_mem>>)
    %c3 = arith.constant 3 : index
    %15 = memref.load %arg1[%c3] : memref<8xi32, #tpu.memory_space<smem>>
    %c3_i32 = arith.constant 3 : i32
    %c0_i32_9 = arith.constant 0 : i32
    %16 = tpu.memref_slice %arg2[%15, %c0_i32_9] : memref<64x256xf32, #tpu.memory_space<any>> -> memref<1x256xf32, #tpu.memory_space<any>>
    %c3_i32_10 = arith.constant 3 : i32
    %c0_i32_11 = arith.constant 0 : i32
    %17 = tpu.memref_slice %arg3[%c3_i32_10, %c0_i32_11] : memref<8x256xf32, #tpu.memory_space<vmem>> -> memref<1x256xf32, #tpu.memory_space<vmem>>
    %18 = tpu.memref_slice %arg4[%c3_i32] : memref<8x!tpu.dma_semaphore, #tpu.memory_space<semaphore_mem>> -> memref<1x!tpu.dma_semaphore, #tpu.memory_space<semaphore_mem>>
    %19 = tpu.memref_squeeze %18 : memref<1x!tpu.dma_semaphore, #tpu.memory_space<semaphore_mem>> -> memref<!tpu.dma_semaphore, #tpu.memory_space<semaphore_mem>>
    tpu.enqueue_dma source(%16 : memref<1x256xf32, #tpu.memory_space<any>>) target(%17 : memref<1x256xf32, #tpu.memory_space<vmem>>) target_semaphore(%19 : memref<!tpu.dma_semaphore, #tpu.memory_space<semaphore_mem>>)
    %c4 = arith.constant 4 : index
    %20 = memref.load %arg1[%c4] : memref<8xi32, #tpu.memory_space<smem>>
    %c4_i32 = arith.constant 4 : i32
    %c0_i32_12 = arith.constant 0 : i32
    %21 = tpu.memref_slice %arg2[%20, %c0_i32_12] : memref<64x256xf32, #tpu.memory_space<any>> -> memref<1x256xf32, #tpu.memory_space<any>>
    %c4_i32_13 = arith.constant 4 : i32
    %c0_i32_14 = arith.constant 0 : i32
    %22 = tpu.memref_slice %arg3[%c4_i32_13, %c0_i32_14] : memref<8x256xf32, #tpu.memory_space<vmem>> -> memref<1x256xf32, #tpu.memory_space<vmem>>
    %23 = tpu.memref_slice %arg4[%c4_i32] : memref<8x!tpu.dma_semaphore, #tpu.memory_space<semaphore_mem>> -> memref<1x!tpu.dma_semaphore, #tpu.memory_space<semaphore_mem>>
    %24 = tpu.memref_squeeze %23 : memref<1x!tpu.dma_semaphore, #tpu.memory_space<semaphore_mem>> -> memref<!tpu.dma_semaphore, #tpu.memory_space<semaphore_mem>>
    tpu.enqueue_dma source(%21 : memref<1x256xf32, #tpu.memory_space<any>>) target(%22 : memref<1x256xf32, #tpu.memory_space<vmem>>) target_semaphore(%24 : memref<!tpu.dma_semaphore, #tpu.memory_space<semaphore_mem>>)
    %c5 = arith.constant 5 : index
    %25 = memref.load %arg1[%c5] : memref<8xi32, #tpu.memory_space<smem>>
    %c5_i32 = arith.constant 5 : i32
    %c0_i32_15 = arith.constant 0 : i32
    %26 = tpu.memref_slice %arg2[%25, %c0_i32_15] : memref<64x256xf32, #tpu.memory_space<any>> -> memref<1x256xf32, #tpu.memory_space<any>>
    %c5_i32_16 = arith.constant 5 : i32
    %c0_i32_17 = arith.constant 0 : i32
    %27 = tpu.memref_slice %arg3[%c5_i32_16, %c0_i32_17] : memref<8x256xf32, #tpu.memory_space<vmem>> -> memref<1x256xf32, #tpu.memory_space<vmem>>
    %28 = tpu.memref_slice %arg4[%c5_i32] : memref<8x!tpu.dma_semaphore, #tpu.memory_space<semaphore_mem>> -> memref<1x!tpu.dma_semaphore, #tpu.memory_space<semaphore_mem>>
    %29 = tpu.memref_squeeze %28 : memref<1x!tpu.dma_semaphore, #tpu.memory_space<semaphore_mem>> -> memref<!tpu.dma_semaphore, #tpu.memory_space<semaphore_mem>>
    tpu.enqueue_dma source(%26 : memref<1x256xf32, #tpu.memory_space<any>>) target(%27 : memref<1x256xf32, #tpu.memory_space<vmem>>) target_semaphore(%29 : memref<!tpu.dma_semaphore, #tpu.memory_space<semaphore_mem>>)
    %c6 = arith.constant 6 : index
    %30 = memref.load %arg1[%c6] : memref<8xi32, #tpu.memory_space<smem>>
    %c6_i32 = arith.constant 6 : i32
    %c0_i32_18 = arith.constant 0 : i32
    %31 = tpu.memref_slice %arg2[%30, %c0_i32_18] : memref<64x256xf32, #tpu.memory_space<any>> -> memref<1x256xf32, #tpu.memory_space<any>>
    %c6_i32_19 = arith.constant 6 : i32
    %c0_i32_20 = arith.constant 0 : i32
    %32 = tpu.memref_slice %arg3[%c6_i32_19, %c0_i32_20] : memref<8x256xf32, #tpu.memory_space<vmem>> -> memref<1x256xf32, #tpu.memory_space<vmem>>
    %33 = tpu.memref_slice %arg4[%c6_i32] : memref<8x!tpu.dma_semaphore, #tpu.memory_space<semaphore_mem>> -> memref<1x!tpu.dma_semaphore, #tpu.memory_space<semaphore_mem>>
    %34 = tpu.memref_squeeze %33 : memref<1x!tpu.dma_semaphore, #tpu.memory_space<semaphore_mem>> -> memref<!tpu.dma_semaphore, #tpu.memory_space<semaphore_mem>>
    tpu.enqueue_dma source(%31 : memref<1x256xf32, #tpu.memory_space<any>>) target(%32 : memref<1x256xf32, #tpu.memory_space<vmem>>) target_semaphore(%34 : memref<!tpu.dma_semaphore, #tpu.memory_space<semaphore_mem>>)
    %c7 = arith.constant 7 : index
    %35 = memref.load %arg1[%c7] : memref<8xi32, #tpu.memory_space<smem>>
    %c7_i32 = arith.constant 7 : i32
    %c0_i32_21 = arith.constant 0 : i32
    %36 = tpu.memref_slice %arg2[%35, %c0_i32_21] : memref<64x256xf32, #tpu.memory_space<any>> -> memref<1x256xf32, #tpu.memory_space<any>>
    %c7_i32_22 = arith.constant 7 : i32
    %c0_i32_23 = arith.constant 0 : i32
    %37 = tpu.memref_slice %arg3[%c7_i32_22, %c0_i32_23] : memref<8x256xf32, #tpu.memory_space<vmem>> -> memref<1x256xf32, #tpu.memory_space<vmem>>
    %38 = tpu.memref_slice %arg4[%c7_i32] : memref<8x!tpu.dma_semaphore, #tpu.memory_space<semaphore_mem>> -> memref<1x!tpu.dma_semaphore, #tpu.memory_space<semaphore_mem>>
    %39 = tpu.memref_squeeze %38 : memref<1x!tpu.dma_semaphore, #tpu.memory_space<semaphore_mem>> -> memref<!tpu.dma_semaphore, #tpu.memory_space<semaphore_mem>>
    tpu.enqueue_dma source(%36 : memref<1x256xf32, #tpu.memory_space<any>>) target(%37 : memref<1x256xf32, #tpu.memory_space<vmem>>) target_semaphore(%39 : memref<!tpu.dma_semaphore, #tpu.memory_space<semaphore_mem>>)
    %c0_24 = arith.constant 0 : index
    %40 = memref.load %arg1[%c0_24] : memref<8xi32, #tpu.memory_space<smem>>
    %c0_i32_25 = arith.constant 0 : i32
    %c0_i32_26 = arith.constant 0 : i32
    %41 = tpu.memref_slice %arg2[%40, %c0_i32_26] : memref<64x256xf32, #tpu.memory_space<any>> -> memref<1x256xf32, #tpu.memory_space<any>>
    %c0_i32_27 = arith.constant 0 : i32
    %c0_i32_28 = arith.constant 0 : i32
    %42 = tpu.memref_slice %arg3[%c0_i32_27, %c0_i32_28] : memref<8x256xf32, #tpu.memory_space<vmem>> -> memref<1x256xf32, #tpu.memory_space<vmem>>
    %43 = tpu.memref_slice %arg4[%c0_i32_25] : memref<8x!tpu.dma_semaphore, #tpu.memory_space<semaphore_mem>> -> memref<1x!tpu.dma_semaphore, #tpu.memory_space<semaphore_mem>>
    %44 = tpu.memref_squeeze %43 : memref<1x!tpu.dma_semaphore, #tpu.memory_space<semaphore_mem>> -> memref<!tpu.dma_semaphore, #tpu.memory_space<semaphore_mem>>
    tpu.wait_dma2 semaphore(%44 : memref<!tpu.dma_semaphore, #tpu.memory_space<semaphore_mem>>) src(%41 : memref<1x256xf32, #tpu.memory_space<any>>) dst(%42 : memref<1x256xf32, #tpu.memory_space<vmem>>)
    %c1_29 = arith.constant 1 : index
    %45 = memref.load %arg1[%c1_29] : memref<8xi32, #tpu.memory_space<smem>>
    %c1_i32_30 = arith.constant 1 : i32
    %c0_i32_31 = arith.constant 0 : i32
    %46 = tpu.memref_slice %arg2[%45, %c0_i32_31] : memref<64x256xf32, #tpu.memory_space<any>> -> memref<1x256xf32, #tpu.memory_space<any>>
    %c1_i32_32 = arith.constant 1 : i32
    %c0_i32_33 = arith.constant 0 : i32
    %47 = tpu.memref_slice %arg3[%c1_i32_32, %c0_i32_33] : memref<8x256xf32, #tpu.memory_space<vmem>> -> memref<1x256xf32, #tpu.memory_space<vmem>>
    %48 = tpu.memref_slice %arg4[%c1_i32_30] : memref<8x!tpu.dma_semaphore, #tpu.memory_space<semaphore_mem>> -> memref<1x!tpu.dma_semaphore, #tpu.memory_space<semaphore_mem>>
    %49 = tpu.memref_squeeze %48 : memref<1x!tpu.dma_semaphore, #tpu.memory_space<semaphore_mem>> -> memref<!tpu.dma_semaphore, #tpu.memory_space<semaphore_mem>>
    tpu.wait_dma2 semaphore(%49 : memref<!tpu.dma_semaphore, #tpu.memory_space<semaphore_mem>>) src(%46 : memref<1x256xf32, #tpu.memory_space<any>>) dst(%47 : memref<1x256xf32, #tpu.memory_space<vmem>>)
    %c2_34 = arith.constant 2 : index
    %50 = memref.load %arg1[%c2_34] : memref<8xi32, #tpu.memory_space<smem>>
    %c2_i32_35 = arith.constant 2 : i32
    %c0_i32_36 = arith.constant 0 : i32
    %51 = tpu.memref_slice %arg2[%50, %c0_i32_36] : memref<64x256xf32, #tpu.memory_space<any>> -> memref<1x256xf32, #tpu.memory_space<any>>
    %c2_i32_37 = arith.constant 2 : i32
    %c0_i32_38 = arith.constant 0 : i32
    %52 = tpu.memref_slice %arg3[%c2_i32_37, %c0_i32_38] : memref<8x256xf32, #tpu.memory_space<vmem>> -> memref<1x256xf32, #tpu.memory_space<vmem>>
    %53 = tpu.memref_slice %arg4[%c2_i32_35] : memref<8x!tpu.dma_semaphore, #tpu.memory_space<semaphore_mem>> -> memref<1x!tpu.dma_semaphore, #tpu.memory_space<semaphore_mem>>
    %54 = tpu.memref_squeeze %53 : memref<1x!tpu.dma_semaphore, #tpu.memory_space<semaphore_mem>> -> memref<!tpu.dma_semaphore, #tpu.memory_space<semaphore_mem>>
    tpu.wait_dma2 semaphore(%54 : memref<!tpu.dma_semaphore, #tpu.memory_space<semaphore_mem>>) src(%51 : memref<1x256xf32, #tpu.memory_space<any>>) dst(%52 : memref<1x256xf32, #tpu.memory_space<vmem>>)
    %c3_39 = arith.constant 3 : index
    %55 = memref.load %arg1[%c3_39] : memref<8xi32, #tpu.memory_space<smem>>
    %c3_i32_40 = arith.constant 3 : i32
    %c0_i32_41 = arith.constant 0 : i32
    %56 = tpu.memref_slice %arg2[%55, %c0_i32_41] : memref<64x256xf32, #tpu.memory_space<any>> -> memref<1x256xf32, #tpu.memory_space<any>>
    %c3_i32_42 = arith.constant 3 : i32
    %c0_i32_43 = arith.constant 0 : i32
    %57 = tpu.memref_slice %arg3[%c3_i32_42, %c0_i32_43] : memref<8x256xf32, #tpu.memory_space<vmem>> -> memref<1x256xf32, #tpu.memory_space<vmem>>
    %58 = tpu.memref_slice %arg4[%c3_i32_40] : memref<8x!tpu.dma_semaphore, #tpu.memory_space<semaphore_mem>> -> memref<1x!tpu.dma_semaphore, #tpu.memory_space<semaphore_mem>>
    %59 = tpu.memref_squeeze %58 : memref<1x!tpu.dma_semaphore, #tpu.memory_space<semaphore_mem>> -> memref<!tpu.dma_semaphore, #tpu.memory_space<semaphore_mem>>
    tpu.wait_dma2 semaphore(%59 : memref<!tpu.dma_semaphore, #tpu.memory_space<semaphore_mem>>) src(%56 : memref<1x256xf32, #tpu.memory_space<any>>) dst(%57 : memref<1x256xf32, #tpu.memory_space<vmem>>)
    %c4_44 = arith.constant 4 : index
    %60 = memref.load %arg1[%c4_44] : memref<8xi32, #tpu.memory_space<smem>>
    %c4_i32_45 = arith.constant 4 : i32
    %c0_i32_46 = arith.constant 0 : i32
    %61 = tpu.memref_slice %arg2[%60, %c0_i32_46] : memref<64x256xf32, #tpu.memory_space<any>> -> memref<1x256xf32, #tpu.memory_space<any>>
    %c4_i32_47 = arith.constant 4 : i32
    %c0_i32_48 = arith.constant 0 : i32
    %62 = tpu.memref_slice %arg3[%c4_i32_47, %c0_i32_48] : memref<8x256xf32, #tpu.memory_space<vmem>> -> memref<1x256xf32, #tpu.memory_space<vmem>>
    %63 = tpu.memref_slice %arg4[%c4_i32_45] : memref<8x!tpu.dma_semaphore, #tpu.memory_space<semaphore_mem>> -> memref<1x!tpu.dma_semaphore, #tpu.memory_space<semaphore_mem>>
    %64 = tpu.memref_squeeze %63 : memref<1x!tpu.dma_semaphore, #tpu.memory_space<semaphore_mem>> -> memref<!tpu.dma_semaphore, #tpu.memory_space<semaphore_mem>>
    tpu.wait_dma2 semaphore(%64 : memref<!tpu.dma_semaphore, #tpu.memory_space<semaphore_mem>>) src(%61 : memref<1x256xf32, #tpu.memory_space<any>>) dst(%62 : memref<1x256xf32, #tpu.memory_space<vmem>>)
    %c5_49 = arith.constant 5 : index
    %65 = memref.load %arg1[%c5_49] : memref<8xi32, #tpu.memory_space<smem>>
    %c5_i32_50 = arith.constant 5 : i32
    %c0_i32_51 = arith.constant 0 : i32
    %66 = tpu.memref_slice %arg2[%65, %c0_i32_51] : memref<64x256xf32, #tpu.memory_space<any>> -> memref<1x256xf32, #tpu.memory_space<any>>
    %c5_i32_52 = arith.constant 5 : i32
    %c0_i32_53 = arith.constant 0 : i32
    %67 = tpu.memref_slice %arg3[%c5_i32_52, %c0_i32_53] : memref<8x256xf32, #tpu.memory_space<vmem>> -> memref<1x256xf32, #tpu.memory_space<vmem>>
    %68 = tpu.memref_slice %arg4[%c5_i32_50] : memref<8x!tpu.dma_semaphore, #tpu.memory_space<semaphore_mem>> -> memref<1x!tpu.dma_semaphore, #tpu.memory_space<semaphore_mem>>
    %69 = tpu.memref_squeeze %68 : memref<1x!tpu.dma_semaphore, #tpu.memory_space<semaphore_mem>> -> memref<!tpu.dma_semaphore, #tpu.memory_space<semaphore_mem>>
    tpu.wait_dma2 semaphore(%69 : memref<!tpu.dma_semaphore, #tpu.memory_space<semaphore_mem>>) src(%66 : memref<1x256xf32, #tpu.memory_space<any>>) dst(%67 : memref<1x256xf32, #tpu.memory_space<vmem>>)
    %c6_54 = arith.constant 6 : index
    %70 = memref.load %arg1[%c6_54] : memref<8xi32, #tpu.memory_space<smem>>
    %c6_i32_55 = arith.constant 6 : i32
    %c0_i32_56 = arith.constant 0 : i32
    %71 = tpu.memref_slice %arg2[%70, %c0_i32_56] : memref<64x256xf32, #tpu.memory_space<any>> -> memref<1x256xf32, #tpu.memory_space<any>>
    %c6_i32_57 = arith.constant 6 : i32
    %c0_i32_58 = arith.constant 0 : i32
    %72 = tpu.memref_slice %arg3[%c6_i32_57, %c0_i32_58] : memref<8x256xf32, #tpu.memory_space<vmem>> -> memref<1x256xf32, #tpu.memory_space<vmem>>
    %73 = tpu.memref_slice %arg4[%c6_i32_55] : memref<8x!tpu.dma_semaphore, #tpu.memory_space<semaphore_mem>> -> memref<1x!tpu.dma_semaphore, #tpu.memory_space<semaphore_mem>>
    %74 = tpu.memref_squeeze %73 : memref<1x!tpu.dma_semaphore, #tpu.memory_space<semaphore_mem>> -> memref<!tpu.dma_semaphore, #tpu.memory_space<semaphore_mem>>
    tpu.wait_dma2 semaphore(%74 : memref<!tpu.dma_semaphore, #tpu.memory_space<semaphore_mem>>) src(%71 : memref<1x256xf32, #tpu.memory_space<any>>) dst(%72 : memref<1x256xf32, #tpu.memory_space<vmem>>)
    %c7_59 = arith.constant 7 : index
    %75 = memref.load %arg1[%c7_59] : memref<8xi32, #tpu.memory_space<smem>>
    %c7_i32_60 = arith.constant 7 : i32
    %c0_i32_61 = arith.constant 0 : i32
    %76 = tpu.memref_slice %arg2[%75, %c0_i32_61] : memref<64x256xf32, #tpu.memory_space<any>> -> memref<1x256xf32, #tpu.memory_space<any>>
    %c7_i32_62 = arith.constant 7 : i32
    %c0_i32_63 = arith.constant 0 : i32
    %77 = tpu.memref_slice %arg3[%c7_i32_62, %c0_i32_63] : memref<8x256xf32, #tpu.memory_space<vmem>> -> memref<1x256xf32, #tpu.memory_space<vmem>>
    %78 = tpu.memref_slice %arg4[%c7_i32_60] : memref<8x!tpu.dma_semaphore, #tpu.memory_space<semaphore_mem>> -> memref<1x!tpu.dma_semaphore, #tpu.memory_space<semaphore_mem>>
    %79 = tpu.memref_squeeze %78 : memref<1x!tpu.dma_semaphore, #tpu.memory_space<semaphore_mem>> -> memref<!tpu.dma_semaphore, #tpu.memory_space<semaphore_mem>>
    tpu.wait_dma2 semaphore(%79 : memref<!tpu.dma_semaphore, #tpu.memory_space<semaphore_mem>>) src(%76 : memref<1x256xf32, #tpu.memory_space<any>>) dst(%77 : memref<1x256xf32, #tpu.memory_space<vmem>>)
    return
  }
  func.func @transform_1(%arg0: i32, %arg1: memref<8xi32, #tpu.memory_space<smem>>) -> (i32, i32) {
    %c0_i32 = arith.constant 0 : i32
    %c0_i32_0 = arith.constant 0 : i32
    %c0_i32_1 = arith.constant 0 : i32
    return %c0_i32, %c0_i32_0 : i32, i32
  }
}

</mosaic_0001>

<llo_original>
// kernel: tpu_custom_call.1
$region0: #{tpu_custom_call.1}
  #allocation0 [shape = 'u32[]', space=smem, size = 0x4, offset = 0x4, fixed_abs, tag = 'smem constant byte address 0x4 - core index']
  #allocation1 [shape = 'u32[144,128]{1,0:T(1,128)}', space=vmem, size = 0x12000, scoped, tag = 'internal scratch']
  #allocation2 [shape = 's32[8]{0}', space=sflag, size = 0x20, scoped, tag = 'scratch operand']
  #allocation3 [shape = 's32[1]{0}', space=sflag, size = 0x4, scoped, tag = 'scoped memory for tpu_custom_call.1']
  #allocation4 [shape = 'u8[512]{0}', space=smem, size = 0x200, scoped, tag = 'prefetched SMEM operand 0']
  #allocation7 [shape = 's32[]', space=sflag, size = 0x4, offset = 0, fixed_abs, tag = 'sflag constant byte address 0x0 - dummy sync flag']
  #allocation8 [shape = 's32[]', space=sflag, size = 0x4, offset = 0, fixed_abs, tag = 'sflag constant byte address 0x0 - dummy sync flag']
  #allocation9 [shape = 's32[]', space=sflag, size = 0x4, offset = 0, fixed_abs, tag = 'sflag constant byte address 0x0 - dummy sync flag']
  #allocation10 [shape = 's32[]', space=sflag, size = 0x4, offset = 0, fixed_abs, tag = 'sflag constant byte address 0x0 - dummy sync flag']
  #allocation11 [shape = 's32[]', space=sflag, size = 0x4, offset = 0, fixed_abs, tag = 'sflag constant byte address 0x0 - dummy sync flag']
  #allocation12 [shape = 's32[]', space=sflag, size = 0x4, offset = 0, fixed_abs, tag = 'sflag constant byte address 0x0 - dummy sync flag']
  #allocation13 [shape = 's32[]', space=sflag, size = 0x4, offset = 0, fixed_abs, tag = 'sflag constant byte address 0x0 - dummy sync flag']
  #allocation14 [shape = 's32[]', space=sflag, size = 0x4, offset = 0, fixed_abs, tag = 'sflag constant byte address 0x0 - dummy sync flag']
  %s0 = inlined_call_operand.hbm [shape: s32[8], index: 0, kind: input, shape index: {}]
  %s1 = inlined_call_operand.hbm [shape: f32[64,256], index: 1, kind: input, shape index: {}]
  %s2 = inlined_call_operand.hbm [shape: f32[8,256], index: 2, kind: output, shape index: {}]
  %s3 = sld [smem:[#allocation0]]
  $region10: #{tpu_custom_call.1} parent=0
    _
  %s5 = ssub.s32 1, %s3
  %s6 = scalar_select 0, %s5, %s3
  %8 = dma.hbm_to_smem %s0, 16, [#allocation4], [#allocation3]
  %9 = dma.done [#allocation3], 16
  %10 = sfence
  $region1: #{tpu_custom_call.1} parent=0
    #allocation5 [shape = 'u8[8192]{0}', space=vmem, size = 0x2000, scoped, tag = 'output window, operand 0, single buffered']
    #allocation6 [shape = 's32[1]{0}', space=sflag, size = 0x4, scoped, tag = 'scoped memory for tpu_custom_call.1']
    %11 = vsyncpa [#allocation6], 0
    %s12 = sld [smem:[#allocation4]]
    %s13 = sshrl.u32 %s12, 3
    %s14 = sand.u32 %s12, 7
    %s15 = smul.u32 %s13, 16
    %s16 = sadd.s32 %s14, %s15
    %s17 = smul.addr %s16, 16
    %s18 = scalar_lea.hbm %s1, %s17
    %s20 = sshll.u32 [#allocation5], 4
    %s21 = int_to_ptr.vmem [resolvable:$true] %s20
    %23 = dma.hbm_to_vmem [thread:$0]  %s18, 32, %s21, [#allocation2], 128, 128, 1
    %s24 = sld [smem:[#allocation4 + $0x1]]
    %s25 = sshrl.u32 %s24, 3
    %s26 = sand.u32 %s24, 7
    %s27 = smul.u32 %s25, 16
    %s28 = sadd.s32 %s26, %s27
    %s29 = smul.addr %s28, 16
    %s30 = scalar_lea.hbm %s1, %s29
    %s31 = scalar_lea.vmem [#allocation5], 1
    %s32 = scalar_lea.sflag [#allocation2], 1
    %s34 = sshll.u32 %s31, 4
    %s35 = int_to_ptr.vmem [resolvable:$true] %s34
    %37 = dma.hbm_to_vmem [thread:$0]  %s30, 32, %s35, %s32, 128, 128, 1
    %s38 = sld [smem:[#allocation4 + $0x2]]
    %s39 = sshrl.u32 %s38, 3
    %s40 = sand.u32 %s38, 7
    %s41 = smul.u32 %s39, 16
    %s42 = sadd.s32 %s40, %s41
    %s43 = smul.addr %s42, 16
    %s44 = scalar_lea.hbm %s1, %s43
    %s45 = scalar_lea.vmem [#allocation5], 2
    %s46 = scalar_lea.sflag [#allocation2], 2
    %s48 = sshll.u32 %s45, 4
    %s49 = int_to_ptr.vmem [resolvable:$true] %s48
    %51 = dma.hbm_to_vmem [thread:$0]  %s44, 32, %s49, %s46, 128, 128, 1
    %s52 = sld [smem:[#allocation4 + $0x3]]
    %s53 = sshrl.u32 %s52, 3
    %s54 = sand.u32 %s52, 7
    %s55 = smul.u32 %s53, 16
    %s56 = sadd.s32 %s54, %s55
    %s57 = smul.addr %s56, 16
    %s58 = scalar_lea.hbm %s1, %s57
    %s59 = scalar_lea.vmem [#allocation5], 3
    %s60 = scalar_lea.sflag [#allocation2], 3
    %s62 = sshll.u32 %s59, 4
    %s63 = int_to_ptr.vmem [resolvable:$true] %s62
    %65 = dma.hbm_to_vmem [thread:$0]  %s58, 32, %s63, %s60, 128, 128, 1
    %s66 = sld [smem:[#allocation4 + $0x4]]
    %s67 = sshrl.u32 %s66, 3
    %s68 = sand.u32 %s66, 7
    %s69 = smul.u32 %s67, 16
    %s70 = sadd.s32 %s68, %s69
    %s71 = smul.addr %s70, 16
    %s72 = scalar_lea.hbm %s1, %s71
    %s73 = scalar_lea.vmem [#allocation5], 4
    %s74 = scalar_lea.sflag [#allocation2], 4
    %s76 = sshll.u32 %s73, 4
    %s77 = int_to_ptr.vmem [resolvable:$true] %s76
    %79 = dma.hbm_to_vmem [thread:$0]  %s72, 32, %s77, %s74, 128, 128, 1
    %s80 = sld [smem:[#allocation4 + $0x5]]
    %s81 = sshrl.u32 %s80, 3
    %s82 = sand.u32 %s80, 7
    %s83 = smul.u32 %s81, 16
    %s84 = sadd.s32 %s82, %s83
    %s85 = smul.addr %s84, 16
    %s86 = scalar_lea.hbm %s1, %s85
    %s87 = scalar_lea.vmem [#allocation5], 5
    %s88 = scalar_lea.sflag [#allocation2], 5
    %s90 = sshll.u32 %s87, 4
    %s91 = int_to_ptr.vmem [resolvable:$true] %s90
    %93 = dma.hbm_to_vmem [thread:$0]  %s86, 32, %s91, %s88, 128, 128, 1
    %s94 = sld [smem:[#allocation4 + $0x6]]
    %s95 = sshrl.u32 %s94, 3
    %s96 = sand.u32 %s94, 7
    %s97 = smul.u32 %s95, 16
    %s98 = sadd.s32 %s96, %s97
    %s99 = smul.addr %s98, 16
    %s100 = scalar_lea.hbm %s1, %s99
    %s101 = scalar_lea.vmem [#allocation5], 6
    %s102 = scalar_lea.sflag [#allocation2], 6
    %s104 = sshll.u32 %s101, 4
    %s105 = int_to_ptr.vmem [resolvable:$true] %s104
    %107 = dma.hbm_to_vmem [thread:$0]  %s100, 32, %s105, %s102, 128, 128, 1
    %s108 = sld [smem:[#allocation4 + $0x7]]
    %s109 = sshrl.u32 %s108, 3
    %s110 = sand.u32 %s108, 7
    %s111 = smul.u32 %s109, 16
    %s112 = sadd.s32 %s110, %s111
    %s113 = smul.addr %s112, 16
    %s114 = scalar_lea.hbm %s1, %s113
    %s115 = scalar_lea.vmem [#allocation5], 7
    %s116 = scalar_lea.sflag [#allocation2], 7
    %s118 = sshll.u32 %s115, 4
    %s119 = int_to_ptr.vmem [resolvable:$true] %s118
    %121 = dma.hbm_to_vmem [thread:$0]  %s114, 32, %s119, %s116, 128, 128, 1
    %s122 = sld [smem:[#allocation4]]
    %s123 = smul.u32 1, 2
    %s124 = sshll.u32 %s123, 4
    %125 = dma.done [#allocation2], %s124
    %s126 = sld [smem:[#allocation4 + $0x1]]
    %s127 = sshll.u32 %s123, 4
    %128 = dma.done %s32, %s127
    %s129 = sld [smem:[#allocation4 + $0x2]]
    %s130 = sshll.u32 %s123, 4
    %131 = dma.done %s46, %s130
    %s132 = sld [smem:[#allocation4 + $0x3]]
    %s133 = sshll.u32 %s123, 4
    %134 = dma.done %s60, %s133
    %s135 = sld [smem:[#allocation4 + $0x4]]
    %s136 = sshll.u32 %s123, 4
    %137 = dma.done %s74, %s136
    %s138 = sld [smem:[#allocation4 + $0x5]]
    %s139 = sshll.u32 %s123, 4
    %140 = dma.done %s88, %s139
    %s141 = sld [smem:[#allocation4 + $0x6]]
    %s142 = sshll.u32 %s123, 4
    %143 = dma.done %s102, %s142
    %s144 = sld [smem:[#allocation4 + $0x7]]
    %s145 = sshll.u32 %s123, 4
    %146 = dma.done %s116, %s145
    // Predicated region
    $region2: #{tpu_custom_call.1} parent=1 // pred_check
      _
    $region3: #{tpu_custom_call.1} parent=1 // pred_check_branch
      %148 = sbr.rel (0) target = $region5
    $region4: #{tpu_custom_call.1} parent=1 // pred_region
      %s150 = ssub.s32 256, 256
      %151 = vsyncadd [#allocation6], %s150
      %s153 = sshll.u32 [#allocation5], 4
      %s154 = int_to_ptr.vmem [resolvable:$true] %s153
      %156 = dma.vmem_to_hbm [thread:$0]  %s154, 256, %s2, [#allocation6]
    $region5: #{tpu_custom_call.1} parent=1 // pred_fallthru
      _
    // Predicated region
    $region6: #{tpu_custom_call.1} parent=1 // pred_check
      _
    $region7: #{tpu_custom_call.1} parent=1 // pred_check_branch
      %158 = sbr.rel (0) target = $region9
    $region8: #{tpu_custom_call.1} parent=1 // pred_region
      %159 = dma.done [#allocation6], 256
    $region9: #{tpu_custom_call.1} parent=1 // pred_fallthru
      _
    %160 = vsyncpa [#allocation6], 1
  %161 = vsyncmov [#allocation2]
  %s162 = vpop.sfrf %161
  %p163 = scmp.eq.s32.totalorder %s162, 0
  %p164 = pneg %p163
  %166 = shalt.err (%p164)
  %s167 = scalar_lea.sflag [#allocation2], 1
  %168 = vsyncmov %s167
  %s169 = vpop.sfrf %168
  %p170 = scmp.eq.s32.totalorder %s169, 0
  %p171 = pneg %p170
  %173 = shalt.err (%p171)
  %s174 = scalar_lea.sflag [#allocation2], 2
  %175 = vsyncmov %s174
  %s176 = vpop.sfrf %175
  %p177 = scmp.eq.s32.totalorder %s176, 0
  %p178 = pneg %p177
  %180 = shalt.err (%p178)
  %s181 = scalar_lea.sflag [#allocation2], 3
  %182 = vsyncmov %s181
  %s183 = vpop.sfrf %182
  %p184 = scmp.eq.s32.totalorder %s183, 0
  %p185 = pneg %p184
  %187 = shalt.err (%p185)
  %s188 = scalar_lea.sflag [#allocation2], 4
  %189 = vsyncmov %s188
  %s190 = vpop.sfrf %189
  %p191 = scmp.eq.s32.totalorder %s190, 0
  %p192 = pneg %p191
  %194 = shalt.err (%p192)
  %s195 = scalar_lea.sflag [#allocation2], 5
  %196 = vsyncmov %s195
  %s197 = vpop.sfrf %196
  %p198 = scmp.eq.s32.totalorder %s197, 0
  %p199 = pneg %p198
  %201 = shalt.err (%p199)
  %s202 = scalar_lea.sflag [#allocation2], 6
  %203 = vsyncmov %s202
  %s204 = vpop.sfrf %203
  %p205 = scmp.eq.s32.totalorder %s204, 0
  %p206 = pneg %p205
  %208 = shalt.err (%p206)
  %s209 = scalar_lea.sflag [#allocation2], 7
  %210 = vsyncmov %s209
  %s211 = vpop.sfrf %210
  %p212 = scmp.eq.s32.totalorder %s211, 0
  %p213 = pneg %p212
  %215 = shalt.err (%p213)

</llo_original>
